<compile_context>
chip_gen: v7x
topology: tpu7x:2x2x1
jax: 0.10.0
libtpu: 0.0.40
codegen_flags: <defaults>
</compile_context>

<pallas_src>
import jax
import jax.numpy as jnp
from jax.experimental import pallas as pl
from jax.experimental.pallas import tpu as pltpu


def _cheb_conv_kernel(x_ref, tktcat_ref, thetacat_ref, o_ref, w_ref):
    """One grid step = one tile of BT_TILE flattened (batch, time) positions.

    x_ref:        (BT_TILE, N, F_in)      input features for this tile
    tktcat_ref:   (N, K*N)                [T_0^T | T_1^T | ...] (resident weights)
    thetacat_ref: (F_in, K*F_out)         [Theta_0 | Theta_1 | ...] (resident)
    o_ref:        (N, BT_TILE*F_out)      lane-dense output slab
    w_ref:        (K*N, BT_TILE*F_out)    VMEM scratch for the re-arranged Z
    """
    bt, n, f_in = x_ref.shape
    kn = tktcat_ref.shape[1]
    kf = thetacat_ref.shape[1]
    k_order = kn // n
    f_out = kf // k_order

    # ---- Stage 1: Z = X_all @ Theta_cat  (single MXU matmul, M = BT_TILE*N) ----
    # rows = (bt, m), lanes = (k, o)
    x2d = x_ref[...].reshape(bt * n, f_in)
    z = jnp.dot(x2d, thetacat_ref[...], preferred_element_type=jnp.float32)

    # ---- In-VMEM rearrangement: (bt, m, k, o) -> (k, m, bt, o) -----------------
    # Folds (bt, o) into the lane dimension for stage 2.  K * BT_TILE static
    # rectangular block copies (all slice starts are compile-time constants).
    for k in range(k_order):
        for b in range(bt):
            w_ref[k * n:(k + 1) * n, b * f_out:(b + 1) * f_out] = (
                z[b * n:(b + 1) * n, k * f_out:(k + 1) * f_out])

    # ---- Stage 2: out = Tcat^T @ W  (K folded into the contraction) -----------
    # (N, K*N) @ (K*N, BT_TILE*F_out): contraction K*N, output lanes BT_TILE*F_out.
    out = jnp.dot(tktcat_ref[...], w_ref[...], preferred_element_type=jnp.float32)
    o_ref[...] = jnp.maximum(out, 0.0).astype(o_ref.dtype)


def _pick_bt_tile(bt_total, f_out, max_tile=64):
    """Largest divisor of bt_total whose output block is lane-dense
    ((tile * f_out) % 128 == 0, or the tile covers the whole array), preferring
    tiles that leave >= 2 grid blocks so both v7x TensorCores get work."""
    candidates = []
    for d in range(1, bt_total + 1):
        if bt_total % d:
            continue
        if d > max_tile and d != bt_total:
            continue
        if (d * f_out) % 128 == 0 or d == bt_total:
            candidates.append(d)
    if not candidates:
        return bt_total
    multi_block = [d for d in candidates if bt_total // d >= 2]
    pool = multi_block if multi_block else candidates
    small = [d for d in pool if d <= max_tile]
    return max(small) if small else max(pool)


def cheb_conv_forward(x, cheb_polynomials, Theta, *, compute_dtype=jnp.float32):
    """
    x:                 (B, N, F_in, T)   float32
    cheb_polynomials:  (K, N, N)         float32
    Theta:             (K, F_in, F_out)  float32
    returns:           (B, N, F_out, T)  float32

    compute_dtype: set to jnp.bfloat16 on v6e/v7x for MXU-rate inputs
                   (accumulation stays float32 inside the kernel).
    """
    B, N, F_in, T = x.shape
    K, _, F_out = Theta.shape
    BT = B * T

    bt_tile = _pick_bt_tile(BT, F_out)
    grid = (BT // bt_tile,)

    # Layout plumbing (single fused XLA ops, done once per call):
    #   x      -> (B*T, N, F_in)      one contiguous slab per grid block
    #   T_k    -> Tcat^T  (N, K*N)    Tcat^T[n, k*N + m]       = T_k[m, n]
    #   Theta  -> Theta_cat (F_in, K*F_out)  Theta_cat[f, k*F_out + o] = Theta_k[f, o]
    x_w = jnp.transpose(x, (0, 3, 1, 2)).reshape(BT, N, F_in).astype(compute_dtype)
    tktcat = (jnp.transpose(cheb_polynomials, (2, 0, 1))
              .reshape(N, K * N).astype(compute_dtype))
    thetacat = (jnp.transpose(Theta, (1, 0, 2))
                .reshape(F_in, K * F_out).astype(compute_dtype))

    # VMEM budget: double-buffered x/out blocks + resident weights + scratch.
    elt = jnp.dtype(compute_dtype).itemsize
    est_bytes = (2 * bt_tile * N * F_in * elt          # x block (double-buffered)
                 + 2 * N * bt_tile * F_out * 4         # out block (double-buffered)
                 + N * K * N * elt                     # Tcat^T (resident)
                 + F_in * K * F_out * elt              # Theta_cat (resident)
                 + K * N * bt_tile * F_out * 4)        # scratch W
    vmem_limit = int(min(max(2 * est_bytes, 16 * 1024 * 1024), 64 * 1024 * 1024))

    out2d = pl.pallas_call(
        _cheb_conv_kernel,
        out_shape=jax.ShapeDtypeStruct((N, BT * F_out), x.dtype),
        grid_spec=pltpu.PrefetchScalarGridSpec(
            num_scalar_prefetch=0,
            grid=grid,
            in_specs=[
                # x: one (bt_tile, N, F_in) slab per grid step.
                pl.BlockSpec((bt_tile, N, F_in), lambda i: (i, 0, 0)),
                # Weights: constant block index -> fetched once, stay resident.
                pl.BlockSpec((N, K * N), lambda i: (0, 0)),
                pl.BlockSpec((F_in, K * F_out), lambda i: (0, 0)),
            ],
            out_specs=pl.BlockSpec((N, bt_tile * F_out), lambda i: (0, i)),
            scratch_shapes=[pltpu.VMEM((K * N, bt_tile * F_out), jnp.float32)],
        ),
        compiler_params=pltpu.CompilerParams(
            dimension_semantics=("parallel",),
            vmem_limit_bytes=vmem_limit,
        ),
    )(x_w, tktcat, thetacat)

    # (N, B*T*F_out) -> (B, N, F_out, T)
    out = out2d.reshape(N, B, T, F_out)
    return jnp.transpose(out, (1, 0, 3, 2))


def _reference(x, cheb_polynomials, Theta):
    # Pure-JAX reference mirroring the PyTorch loop.
    B, N, F_in, T = x.shape
    K, _, F_out = Theta.shape
    outs = []
    for t in range(T):
        gs = x[:, :, :, t]                                  # (B, N, F_in)
        acc = jnp.zeros((B, N, F_out), dtype=jnp.float32)
        for k in range(K):
            T_k = cheb_polynomials[k]
            rhs = jnp.transpose(
                jnp.matmul(jnp.transpose(gs, (0, 2, 1)), T_k), (0, 2, 1))
            acc = acc + jnp.matmul(rhs, Theta[k])
        outs.append(acc[..., None])
    return jax.nn.relu(jnp.concatenate(outs, axis=-1))


if __name__ == "__main__":
    key = jax.random.PRNGKey(0)
    B, N, F_in, F_out, T, K = 2, 16, 4, 32, 8, 3

    k1, k2, k3 = jax.random.split(key, 3)

    # Deterministic Chebyshev polynomials from a scaled Laplacian of a random
    # symmetric adjacency.
    A = jax.random.uniform(k1, (N, N), dtype=jnp.float32)
    A = 0.5 * (A + A.T)
    D = jnp.diag(jnp.sum(A, axis=1))
    L = D - A
    lam_max = jnp.max(jnp.linalg.eigvalsh(L))
    L_tilde = (2.0 / lam_max) * L - jnp.eye(N, dtype=jnp.float32)
    chebs = [jnp.eye(N, dtype=jnp.float32), L_tilde]
    for _ in range(2, K):
        chebs.append(2.0 * L_tilde @ chebs[-1] - chebs[-2])
    cheb_polynomials = jnp.stack(chebs[:K], axis=0)          # (K, N, N)

    # Theta parameters (module uses uninitialized FloatTensor; use a normal draw).
    Theta = 0.1 * jax.random.normal(k2, (K, F_in, F_out), dtype=jnp.float32)

    # Input x: (B, N, F_in, T)
    x = jax.random.normal(k3, (B, N, F_in, T), dtype=jnp.float32)

    out = cheb_conv_forward(x, cheb_polynomials, Theta)
    out = jax.block_until_ready(out)

    ref = _reference(x, cheb_polynomials, Theta)
    assert out.shape == (B, N, F_out, T), out.shape
    assert jnp.allclose(out, ref, atol=1e-4, rtol=1e-4), "mismatch vs reference"

    print("KERNEL_OK")
</pallas_src>

<mosaic_0001>
module attributes {stable_mosaic.version = 11 : i64} {
  func.func @_cheb_conv_kernel(%arg0: i32, %arg1: memref<8x16x4xf32, #tpu.memory_space<vmem>>, %arg2: memref<16x48xf32, #tpu.memory_space<vmem>>, %arg3: memref<4x96xf32, #tpu.memory_space<vmem>>, %arg4: memref<16x256xf32, #tpu.memory_space<vmem>>, %arg5: memref<48x256xf32, #tpu.memory_space<vmem>>) attributes {dimension_semantics = [#tpu.dimension_semantics<parallel>], iteration_bounds = array<i64: 2>, scalar_prefetch = 0 : i64, scratch_operands = 1 : i64, tpu.core_type = #tpu.core_type<tc>, window_params = [{transform_indices = @transform_0, window_bounds = array<i64: 8, 16, 4>}, {pipeline_mode = #tpu.pipeline_mode<synchronous>, transform_indices = @transform_1, window_bounds = array<i64: 16, 48>}, {pipeline_mode = #tpu.pipeline_mode<synchronous>, transform_indices = @transform_2, window_bounds = array<i64: 4, 96>}, {transform_indices = @transform_3, window_bounds = array<i64: 16, 256>}]} {
    %c0 = arith.constant 0 : index
    %c0_0 = arith.constant 0 : index
    %c0_1 = arith.constant 0 : index
    %0 = vector.load %arg1[%c0, %c0_0, %c0_1] : memref<8x16x4xf32, #tpu.memory_space<vmem>>, vector<8x16x4xf32>
    %1 = vector.shape_cast %0 : vector<8x16x4xf32> to vector<128x4xf32>
    %c0_2 = arith.constant 0 : index
    %c0_3 = arith.constant 0 : index
    %2 = vector.load %arg3[%c0_2, %c0_3] : memref<4x96xf32, #tpu.memory_space<vmem>>, vector<4x96xf32>
    %cst = arith.constant dense<0.000000e+00> : vector<128x96xf32>
    %3 = tpu.matmul %1, %2, %cst {dimension_numbers = #tpu.dot_dimension_numbers<[1], [0], [0], [1], [0, 0, 1, 1], [], []>} : vector<128x4xf32>, vector<4x96xf32>, vector<128x96xf32> -> vector<128x96xf32>
    %4 = vector.extract_strided_slice %3 {offsets = [0, 0], sizes = [16, 32], strides = [1, 1]} : vector<128x96xf32> to vector<16x32xf32>
    %c0_4 = arith.constant 0 : index
    %c0_5 = arith.constant 0 : index
    %5 = vector.load %arg5[%c0_4, %c0_5] : memref<48x256xf32, #tpu.memory_space<vmem>>, vector<16x32xf32>
    tpu.vector_store %arg5[%c0_4, %c0_5], %4 {strides = array<i32>} : memref<48x256xf32, #tpu.memory_space<vmem>>, vector<16x32xf32>,
    %6 = vector.extract_strided_slice %3 {offsets = [16, 0], sizes = [16, 32], strides = [1, 1]} : vector<128x96xf32> to vector<16x32xf32>
    %c0_6 = arith.constant 0 : index
    %c32 = arith.constant 32 : index
    %7 = vector.load %arg5[%c0_6, %c32] : memref<48x256xf32, #tpu.memory_space<vmem>>, vector<16x32xf32>
    tpu.vector_store %arg5[%c0_6, %c32], %6 {strides = array<i32>} : memref<48x256xf32, #tpu.memory_space<vmem>>, vector<16x32xf32>,
    %8 = vector.extract_strided_slice %3 {offsets = [32, 0], sizes = [16, 32], strides = [1, 1]} : vector<128x96xf32> to vector<16x32xf32>
    %c0_7 = arith.constant 0 : index
    %c64 = arith.constant 64 : index
    %9 = vector.load %arg5[%c0_7, %c64] : memref<48x256xf32, #tpu.memory_space<vmem>>, vector<16x32xf32>
    tpu.vector_store %arg5[%c0_7, %c64], %8 {strides = array<i32>} : memref<48x256xf32, #tpu.memory_space<vmem>>, vector<16x32xf32>,
    %10 = vector.extract_strided_slice %3 {offsets = [48, 0], sizes = [16, 32], strides = [1, 1]} : vector<128x96xf32> to vector<16x32xf32>
    %c0_8 = arith.constant 0 : index
    %c96 = arith.constant 96 : index
    %11 = vector.load %arg5[%c0_8, %c96] : memref<48x256xf32, #tpu.memory_space<vmem>>, vector<16x32xf32>
    tpu.vector_store %arg5[%c0_8, %c96], %10 {strides = array<i32>} : memref<48x256xf32, #tpu.memory_space<vmem>>, vector<16x32xf32>,
    %12 = vector.extract_strided_slice %3 {offsets = [64, 0], sizes = [16, 32], strides = [1, 1]} : vector<128x96xf32> to vector<16x32xf32>
    %c0_9 = arith.constant 0 : index
    %c128 = arith.constant 128 : index
    %13 = vector.load %arg5[%c0_9, %c128] : memref<48x256xf32, #tpu.memory_space<vmem>>, vector<16x32xf32>
    tpu.vector_store %arg5[%c0_9, %c128], %12 {strides = array<i32>} : memref<48x256xf32, #tpu.memory_space<vmem>>, vector<16x32xf32>,
    %14 = vector.extract_strided_slice %3 {offsets = [80, 0], sizes = [16, 32], strides = [1, 1]} : vector<128x96xf32> to vector<16x32xf32>
    %c0_10 = arith.constant 0 : index
    %c160 = arith.constant 160 : index
    %15 = vector.load %arg5[%c0_10, %c160] : memref<48x256xf32, #tpu.memory_space<vmem>>, vector<16x32xf32>
    tpu.vector_store %arg5[%c0_10, %c160], %14 {strides = array<i32>} : memref<48x256xf32, #tpu.memory_space<vmem>>, vector<16x32xf32>,
    %16 = vector.extract_strided_slice %3 {offsets = [96, 0], sizes = [16, 32], strides = [1, 1]} : vector<128x96xf32> to vector<16x32xf32>
    %c0_11 = arith.constant 0 : index
    %c192 = arith.constant 192 : index
    %17 = vector.load %arg5[%c0_11, %c192] : memref<48x256xf32, #tpu.memory_space<vmem>>, vector<16x32xf32>
    tpu.vector_store %arg5[%c0_11, %c192], %16 {strides = array<i32>} : memref<48x256xf32, #tpu.memory_space<vmem>>, vector<16x32xf32>,
    %18 = vector.extract_strided_slice %3 {offsets = [112, 0], sizes = [16, 32], strides = [1, 1]} : vector<128x96xf32> to vector<16x32xf32>
    %c0_12 = arith.constant 0 : index
    %c224 = arith.constant 224 : index
    %19 = vector.load %arg5[%c0_12, %c224] : memref<48x256xf32, #tpu.memory_space<vmem>>, vector<16x32xf32>
    tpu.vector_store %arg5[%c0_12, %c224], %18 {strides = array<i32>} : memref<48x256xf32, #tpu.memory_space<vmem>>, vector<16x32xf32>,
    %20 = vector.extract_strided_slice %3 {offsets = [0, 32], sizes = [16, 32], strides = [1, 1]} : vector<128x96xf32> to vector<16x32xf32>
    %c16 = arith.constant 16 : index
    %c0_13 = arith.constant 0 : index
    %21 = vector.load %arg5[%c16, %c0_13] : memref<48x256xf32, #tpu.memory_space<vmem>>, vector<16x32xf32>
    tpu.vector_store %arg5[%c16, %c0_13], %20 {strides = array<i32>} : memref<48x256xf32, #tpu.memory_space<vmem>>, vector<16x32xf32>,
    %22 = vector.extract_strided_slice %3 {offsets = [16, 32], sizes = [16, 32], strides = [1, 1]} : vector<128x96xf32> to vector<16x32xf32>
    %c16_14 = arith.constant 16 : index
    %c32_15 = arith.constant 32 : index
    %23 = vector.load %arg5[%c16_14, %c32_15] : memref<48x256xf32, #tpu.memory_space<vmem>>, vector<16x32xf32>
    tpu.vector_store %arg5[%c16_14, %c32_15], %22 {strides = array<i32>} : memref<48x256xf32, #tpu.memory_space<vmem>>, vector<16x32xf32>,
    %24 = vector.extract_strided_slice %3 {offsets = [32, 32], sizes = [16, 32], strides = [1, 1]} : vector<128x96xf32> to vector<16x32xf32>
    %c16_16 = arith.constant 16 : index
    %c64_17 = arith.constant 64 : index
    %25 = vector.load %arg5[%c16_16, %c64_17] : memref<48x256xf32, #tpu.memory_space<vmem>>, vector<16x32xf32>
    tpu.vector_store %arg5[%c16_16, %c64_17], %24 {strides = array<i32>} : memref<48x256xf32, #tpu.memory_space<vmem>>, vector<16x32xf32>,
    %26 = vector.extract_strided_slice %3 {offsets = [48, 32], sizes = [16, 32], strides = [1, 1]} : vector<128x96xf32> to vector<16x32xf32>
    %c16_18 = arith.constant 16 : index
    %c96_19 = arith.constant 96 : index
    %27 = vector.load %arg5[%c16_18, %c96_19] : memref<48x256xf32, #tpu.memory_space<vmem>>, vector<16x32xf32>
    tpu.vector_store %arg5[%c16_18, %c96_19], %26 {strides = array<i32>} : memref<48x256xf32, #tpu.memory_space<vmem>>, vector<16x32xf32>,
    %28 = vector.extract_strided_slice %3 {offsets = [64, 32], sizes = [16, 32], strides = [1, 1]} : vector<128x96xf32> to vector<16x32xf32>
    %c16_20 = arith.constant 16 : index
    %c128_21 = arith.constant 128 : index
    %29 = vector.load %arg5[%c16_20, %c128_21] : memref<48x256xf32, #tpu.memory_space<vmem>>, vector<16x32xf32>
    tpu.vector_store %arg5[%c16_20, %c128_21], %28 {strides = array<i32>} : memref<48x256xf32, #tpu.memory_space<vmem>>, vector<16x32xf32>,
    %30 = vector.extract_strided_slice %3 {offsets = [80, 32], sizes = [16, 32], strides = [1, 1]} : vector<128x96xf32> to vector<16x32xf32>
    %c16_22 = arith.constant 16 : index
    %c160_23 = arith.constant 160 : index
    %31 = vector.load %arg5[%c16_22, %c160_23] : memref<48x256xf32, #tpu.memory_space<vmem>>, vector<16x32xf32>
    tpu.vector_store %arg5[%c16_22, %c160_23], %30 {strides = array<i32>} : memref<48x256xf32, #tpu.memory_space<vmem>>, vector<16x32xf32>,
    %32 = vector.extract_strided_slice %3 {offsets = [96, 32], sizes = [16, 32], strides = [1, 1]} : vector<128x96xf32> to vector<16x32xf32>
    %c16_24 = arith.constant 16 : index
    %c192_25 = arith.constant 192 : index
    %33 = vector.load %arg5[%c16_24, %c192_25] : memref<48x256xf32, #tpu.memory_space<vmem>>, vector<16x32xf32>
    tpu.vector_store %arg5[%c16_24, %c192_25], %32 {strides = array<i32>} : memref<48x256xf32, #tpu.memory_space<vmem>>, vector<16x32xf32>,
    %34 = vector.extract_strided_slice %3 {offsets = [112, 32], sizes = [16, 32], strides = [1, 1]} : vector<128x96xf32> to vector<16x32xf32>
    %c16_26 = arith.constant 16 : index
    %c224_27 = arith.constant 224 : index
    %35 = vector.load %arg5[%c16_26, %c224_27] : memref<48x256xf32, #tpu.memory_space<vmem>>, vector<16x32xf32>
    tpu.vector_store %arg5[%c16_26, %c224_27], %34 {strides = array<i32>} : memref<48x256xf32, #tpu.memory_space<vmem>>, vector<16x32xf32>,
    %36 = vector.extract_strided_slice %3 {offsets = [0, 64], sizes = [16, 32], strides = [1, 1]} : vector<128x96xf32> to vector<16x32xf32>
    %c32_28 = arith.constant 32 : index
    %c0_29 = arith.constant 0 : index
    %37 = vector.load %arg5[%c32_28, %c0_29] : memref<48x256xf32, #tpu.memory_space<vmem>>, vector<16x32xf32>
    tpu.vector_store %arg5[%c32_28, %c0_29], %36 {strides = array<i32>} : memref<48x256xf32, #tpu.memory_space<vmem>>, vector<16x32xf32>,
    %38 = vector.extract_strided_slice %3 {offsets = [16, 64], sizes = [16, 32], strides = [1, 1]} : vector<128x96xf32> to vector<16x32xf32>
    %c32_30 = arith.constant 32 : index
    %c32_31 = arith.constant 32 : index
    %39 = vector.load %arg5[%c32_30, %c32_31] : memref<48x256xf32, #tpu.memory_space<vmem>>, vector<16x32xf32>
    tpu.vector_store %arg5[%c32_30, %c32_31], %38 {strides = array<i32>} : memref<48x256xf32, #tpu.memory_space<vmem>>, vector<16x32xf32>,
    %40 = vector.extract_strided_slice %3 {offsets = [32, 64], sizes = [16, 32], strides = [1, 1]} : vector<128x96xf32> to vector<16x32xf32>
    %c32_32 = arith.constant 32 : index
    %c64_33 = arith.constant 64 : index
    %41 = vector.load %arg5[%c32_32, %c64_33] : memref<48x256xf32, #tpu.memory_space<vmem>>, vector<16x32xf32>
    tpu.vector_store %arg5[%c32_32, %c64_33], %40 {strides = array<i32>} : memref<48x256xf32, #tpu.memory_space<vmem>>, vector<16x32xf32>,
    %42 = vector.extract_strided_slice %3 {offsets = [48, 64], sizes = [16, 32], strides = [1, 1]} : vector<128x96xf32> to vector<16x32xf32>
    %c32_34 = arith.constant 32 : index
    %c96_35 = arith.constant 96 : index
    %43 = vector.load %arg5[%c32_34, %c96_35] : memref<48x256xf32, #tpu.memory_space<vmem>>, vector<16x32xf32>
    tpu.vector_store %arg5[%c32_34, %c96_35], %42 {strides = array<i32>} : memref<48x256xf32, #tpu.memory_space<vmem>>, vector<16x32xf32>,
    %44 = vector.extract_strided_slice %3 {offsets = [64, 64], sizes = [16, 32], strides = [1, 1]} : vector<128x96xf32> to vector<16x32xf32>
    %c32_36 = arith.constant 32 : index
    %c128_37 = arith.constant 128 : index
    %45 = vector.load %arg5[%c32_36, %c128_37] : memref<48x256xf32, #tpu.memory_space<vmem>>, vector<16x32xf32>
    tpu.vector_store %arg5[%c32_36, %c128_37], %44 {strides = array<i32>} : memref<48x256xf32, #tpu.memory_space<vmem>>, vector<16x32xf32>,
    %46 = vector.extract_strided_slice %3 {offsets = [80, 64], sizes = [16, 32], strides = [1, 1]} : vector<128x96xf32> to vector<16x32xf32>
    %c32_38 = arith.constant 32 : index
    %c160_39 = arith.constant 160 : index
    %47 = vector.load %arg5[%c32_38, %c160_39] : memref<48x256xf32, #tpu.memory_space<vmem>>, vector<16x32xf32>
    tpu.vector_store %arg5[%c32_38, %c160_39], %46 {strides = array<i32>} : memref<48x256xf32, #tpu.memory_space<vmem>>, vector<16x32xf32>,
    %48 = vector.extract_strided_slice %3 {offsets = [96, 64], sizes = [16, 32], strides = [1, 1]} : vector<128x96xf32> to vector<16x32xf32>
    %c32_40 = arith.constant 32 : index
    %c192_41 = arith.constant 192 : index
    %49 = vector.load %arg5[%c32_40, %c192_41] : memref<48x256xf32, #tpu.memory_space<vmem>>, vector<16x32xf32>
    tpu.vector_store %arg5[%c32_40, %c192_41], %48 {strides = array<i32>} : memref<48x256xf32, #tpu.memory_space<vmem>>, vector<16x32xf32>,
    %50 = vector.extract_strided_slice %3 {offsets = [112, 64], sizes = [16, 32], strides = [1, 1]} : vector<128x96xf32> to vector<16x32xf32>
    %c32_42 = arith.constant 32 : index
    %c224_43 = arith.constant 224 : index
    %51 = vector.load %arg5[%c32_42, %c224_43] : memref<48x256xf32, #tpu.memory_space<vmem>>, vector<16x32xf32>
    tpu.vector_store %arg5[%c32_42, %c224_43], %50 {strides = array<i32>} : memref<48x256xf32, #tpu.memory_space<vmem>>, vector<16x32xf32>,
    %c0_44 = arith.constant 0 : index
    %c0_45 = arith.constant 0 : index
    %52 = vector.load %arg2[%c0_44, %c0_45] : memref<16x48xf32, #tpu.memory_space<vmem>>, vector<16x48xf32>
    %c0_46 = arith.constant 0 : index
    %c0_47 = arith.constant 0 : index
    %53 = vector.load %arg5[%c0_46, %c0_47] : memref<48x256xf32, #tpu.memory_space<vmem>>, vector<48x256xf32>
    %cst_48 = arith.constant dense<0.000000e+00> : vector<16x256xf32>
    %54 = tpu.matmul %52, %53, %cst_48 {dimension_numbers = #tpu.dot_dimension_numbers<[1], [0], [0], [1], [0, 0, 1, 1], [], []>} : vector<16x48xf32>, vector<48x256xf32>, vector<16x256xf32> -> vector<16x256xf32>
    %cst_49 = arith.constant 0.000000e+00 : f32
    %55 = vector.broadcast %cst_49 : f32 to vector<16x256xf32>
    %56 = arith.maximumf %54, %55 : vector<16x256xf32>
    %c0_50 = arith.constant 0 : index
    %c0_51 = arith.constant 0 : index
    %57 = vector.load %arg4[%c0_50, %c0_51] : memref<16x256xf32, #tpu.memory_space<vmem>>, vector<16x256xf32>
    tpu.vector_store %arg4[%c0_50, %c0_51], %56 {strides = array<i32>} : memref<16x256xf32, #tpu.memory_space<vmem>>, vector<16x256xf32>,
    return
  }
  func.func @transform_0(%arg0: i32) -> (i32, i32, i32) {
    %c0_i32 = arith.constant 0 : i32
    %c0_i32_0 = arith.constant 0 : i32
    %c0_i32_1 = arith.constant 0 : i32
    return %arg0, %c0_i32, %c0_i32_0 : i32, i32, i32
  }
  func.func @transform_1(%arg0: i32) -> (i32, i32) {
    %c0_i32 = arith.constant 0 : i32
    %c0_i32_0 = arith.constant 0 : i32
    %c0_i32_1 = arith.constant 0 : i32
    return %c0_i32, %c0_i32_0 : i32, i32
  }
  func.func @transform_2(%arg0: i32) -> (i32, i32) {
    %c0_i32 = arith.constant 0 : i32
    %c0_i32_0 = arith.constant 0 : i32
    %c0_i32_1 = arith.constant 0 : i32
    return %c0_i32, %c0_i32_0 : i32, i32
  }
  func.func @transform_3(%arg0: i32) -> (i32, i32) {
    %c0_i32 = arith.constant 0 : i32
    %c0_i32_0 = arith.constant 0 : i32
    return %c0_i32, %arg0 : i32, i32
  }
}

</mosaic_0001>

<llo_original>
// kernel: tpu_custom_call.1
$region0: #{tpu_custom_call.1}
  #allocation0 [shape = 'u32[]', space=smem, size = 0x4, offset = 0x4, fixed_abs, tag = 'smem constant byte address 0x4 - core index']
  #allocation1 [shape = 'u32[144,128]{1,0:T(1,128)}', space=vmem, size = 0x12000, scoped, tag = 'internal scratch']
  #allocation2 [shape = 'f32[48,256]{1,0:T(8,128)}', space=vmem, size = 0xc000, scoped, tag = 'scratch operand']
  %s0 = inlined_call_operand.vmem [shape: f32[16,16,4], index: 0, kind: input, shape index: {}]
  %s1 = inlined_call_operand.vmem [shape: f32[16,48], index: 1, kind: input, shape index: {}]
  %s2 = inlined_call_operand.vmem [shape: f32[4,96], index: 2, kind: input, shape index: {}]
  %s3 = inlined_call_operand.hbm [shape: f32[16,512], index: 3, kind: output, shape index: {}]
  %s4 = sld [smem:[#allocation0]]
  $region45: #{tpu_custom_call.1} parent=0
    _
  %s6 = ssub.s32 1, %s4
  %s7 = scalar_select 0, %s6, %s4
  $region1: #{tpu_custom_call.1} parent=0
    #allocation3 [shape = 'u8[32768]{0}', space=vmem, size = 0x8000, scoped, tag = 'output window, operand 0']
    #allocation4 [shape = 's32[2]{0}', space=sflag, size = 0x8, scoped, tag = 'scoped memory for tpu_custom_call.1']
    %8 = vsyncpa [#allocation4], 0
    %s9 = scalar_lea.sflag [#allocation4], 1
    %10 = vsyncpa %s9, 0
    loop: start=0, step=1, limit=4
    $region2: #{tpu_custom_call.1} parent=1 // loop_pre_header
      _
    $region3: #{tpu_custom_call.1} parent=1 // loop_header
      %s12 = sphi 0, %s16
      %p13 = scmp.ge.s32.totalorder %s12, 4
      %s22 = sphi 0, %s24
      %s25 = sphi 0, %s22
      %s26 = sphi 0, %s25
      %s42 = sphi 0, %s26
      %s46 = sphi 0, %s46
      %s48 = sphi 0, %s46
      %s49 = sphi 0, %s48
      %s63 = sphi 0, %s49
      %s67 = sphi 0, %s67
      %s69 = sphi 0, %s67
      %s70 = sphi 0, %s69
      %s84 = sphi 0, %s70
      %s90 = sphi 0, %s92
      %s93 = sphi 0, %s90
      %s94 = sphi 0, %s93
      %s110 = sphi 0, %s94
    $region4: #{tpu_custom_call.1} parent=1 // loop_header_branch
      %15 = sbr.rel (%p13) target = $region8
    $region5: #{tpu_custom_call.1} parent=1 // loop_body
      %s17 = ssub.s32 %s12, 1
      %s18 = ssub.s32 %s12, 2
      %s19 = sadd.s32 %s12, 1
      %s20 = ssub.s32 %s12, %s19
      %p21 = scmp.eq.s32.totalorder %s20, 0
      %s23 = sadd.s32 %s22, 1
      %s24 = scalar_select %p21, %s22, %s23
      %p27 = pneg %p21
      %p28 = scmp.eq.s32.totalorder %s12, 1
      %p29 = por %p27, %p28
      %p30 = scmp.ne.s32.totalorder %s22, %s25
      %p31 = scmp.eq.s32.totalorder %s12, 0
      %p32 = por %p30, %p31
      %p33 = scmp.ne.s32.totalorder %s22, %s25
      %p34 = scmp.eq.s32.totalorder %s17, 1
      %p35 = por %p33, %p34
      %p36 = scmp.ne.s32.totalorder %s25, %s26
      %p37 = scmp.eq.s32.totalorder %s17, 0
      %p38 = por %p36, %p37
      %p39 = scmp.ne.s32.totalorder %s25, %s26
      %p40 = scmp.eq.s32.totalorder %s18, 1
      %p41 = por %p39, %p40
      %p43 = scmp.ne.s32.totalorder %s26, %s42
      %p44 = scmp.eq.s32.totalorder %s18, 0
      %p45 = por %p43, %p44
      %s47 = sadd.s32 %s46, 1
      %p50 = scmp.eq.s32.totalorder %s12, 1
      %p51 = scmp.ne.s32.totalorder %s46, %s48
      %p52 = scmp.eq.s32.totalorder %s12, 0
      %p53 = por %p51, %p52
      %p54 = scmp.ne.s32.totalorder %s46, %s48
      %p55 = scmp.eq.s32.totalorder %s17, 1
      %p56 = por %p54, %p55
      %p57 = scmp.ne.s32.totalorder %s48, %s49
      %p58 = scmp.eq.s32.totalorder %s17, 0
      %p59 = por %p57, %p58
      %p60 = scmp.ne.s32.totalorder %s48, %s49
      %p61 = scmp.eq.s32.totalorder %s18, 1
      %p62 = por %p60, %p61
      %p64 = scmp.ne.s32.totalorder %s49, %s63
      %p65 = scmp.eq.s32.totalorder %s18, 0
      %p66 = por %p64, %p65
      %s68 = sadd.s32 %s67, 1
      %p71 = scmp.eq.s32.totalorder %s12, 1
      %p72 = scmp.ne.s32.totalorder %s67, %s69
      %p73 = scmp.eq.s32.totalorder %s12, 0
      %p74 = por %p72, %p73
      %p75 = scmp.ne.s32.totalorder %s67, %s69
      %p76 = scmp.eq.s32.totalorder %s17, 1
      %p77 = por %p75, %p76
      %p78 = scmp.ne.s32.totalorder %s69, %s70
      %p79 = scmp.eq.s32.totalorder %s17, 0
      %p80 = por %p78, %p79
      %p81 = scmp.ne.s32.totalorder %s69, %s70
      %p82 = scmp.eq.s32.totalorder %s18, 1
      %p83 = por %p81, %p82
      %p85 = scmp.ne.s32.totalorder %s70, %s84
      %p86 = scmp.eq.s32.totalorder %s18, 0
      %p87 = por %p85, %p86
      %s88 = ssub.s32 %s12, %s19
      %p89 = scmp.eq.s32.totalorder %s88, 0
      %s91 = sadd.s32 %s90, 1
      %s92 = scalar_select %p89, %s90, %s91
      %p95 = pneg %p89
      %p96 = scmp.eq.s32.totalorder %s12, 1
      %p97 = por %p95, %p96
      %p98 = scmp.ne.s32.totalorder %s90, %s93
      %p99 = scmp.eq.s32.totalorder %s12, 0
      %p100 = por %p98, %p99
      %p101 = scmp.ne.s32.totalorder %s90, %s93
      %p102 = scmp.eq.s32.totalorder %s17, 1
      %p103 = por %p101, %p102
      %p104 = scmp.ne.s32.totalorder %s93, %s94
      %p105 = scmp.eq.s32.totalorder %s17, 0
      %p106 = por %p104, %p105
      %p107 = scmp.ne.s32.totalorder %s93, %s94
      %p108 = scmp.eq.s32.totalorder %s18, 1
      %p109 = por %p107, %p108
      %p111 = scmp.ne.s32.totalorder %s94, %s110
      %p112 = scmp.eq.s32.totalorder %s18, 0
      %p113 = por %p111, %p112
      %p114 = scmp.le.s32.totalorder 1, %s12
      %p115 = scmp.lt.s32.totalorder %s12, 3
      %p116 = pnand %p114, %p115
      %p117 = pneg %p116
      // Predicated region
      $region9: #{tpu_custom_call.1} parent=5 // pred_check
        _
      $region10: #{tpu_custom_call.1} parent=5 // pred_check_branch
        %119 = sbr.rel (%p116) target = $region12
      $region11: #{tpu_custom_call.1} parent=5 // pred_region
        %s120 = ssub.s32 %s12, 1
        // Predicated region
        $region13: #{tpu_custom_call.1} parent=11 // pred_check
          %p121 = pneg %p59
        $region14: #{tpu_custom_call.1} parent=11 // pred_check_branch
          %123 = sbr.rel (%p121) target = $region16
        $region15: #{tpu_custom_call.1} parent=11 // pred_region
          _
        $region16: #{tpu_custom_call.1} parent=11 // pred_fallthru
          _
        // Predicated region
        $region17: #{tpu_custom_call.1} parent=11 // pred_check
          %p124 = pneg %p80
        $region18: #{tpu_custom_call.1} parent=11 // pred_check_branch
          %126 = sbr.rel (%p124) target = $region20
        $region19: #{tpu_custom_call.1} parent=11 // pred_region
          _
        $region20: #{tpu_custom_call.1} parent=11 // pred_fallthru
          _
      $region12: #{tpu_custom_call.1} parent=5 // pred_fallthru
        _
      %p127 = scmp.lt.s32.totalorder %s12, 2
      // Predicated region
      $region21: #{tpu_custom_call.1} parent=5 // pred_check
        %p128 = pneg %p127
      $region22: #{tpu_custom_call.1} parent=5 // pred_check_branch
        %130 = sbr.rel (%p128) target = $region24
      $region23: #{tpu_custom_call.1} parent=5 // pred_region
        // Predicated region
        $region25: #{tpu_custom_call.1} parent=23 // pred_check
          %p131 = pneg %p32
        $region26: #{tpu_custom_call.1} parent=23 // pred_check_branch
          %133 = sbr.rel (%p131) target = $region28
        $region27: #{tpu_custom_call.1} parent=23 // pred_region
          %s134 = smul.u32 8, %s12
          %p135 = scmp.lt.s32.totalorder %s134, 15
          %s136 = scalar_select %p135, %s134, 15
          %s137 = smul.addr %s136, 2
          %s138 = smul.addr %s137, 8
          %s139 = scalar_lea.vmem %s0, %s138
          %s140 = smul.u32 8, %s12
        $region28: #{tpu_custom_call.1} parent=23 // pred_fallthru
          _
      $region24: #{tpu_custom_call.1} parent=5 // pred_fallthru
        _
      %p141 = scmp.le.s32.totalorder 1, %s12
      %p142 = scmp.lt.s32.totalorder %s12, 3
      %p143 = pnand %p141, %p142
      %p144 = pneg %p143
      // Predicated region
      $region29: #{tpu_custom_call.1} parent=5 // pred_check
        _
      $region30: #{tpu_custom_call.1} parent=5 // pred_check_branch
        %146 = sbr.rel (%p143) target = $region32
      $region31: #{tpu_custom_call.1} parent=5 // pred_region
        %s147 = ssub.s32 %s12, 1
        %s148 = smul.u32 8, %s17
        %p149 = scmp.lt.s32.totalorder %s148, 15
        %s150 = scalar_select %p149, %s148, 15
        %s151 = smul.addr %s150, 2
        %s152 = smul.addr %s151, 8
        %s153 = scalar_lea.vmem %s0, %s152
        %p154 = pneg %p38
        %p155 = pneg %p35
        %p156 = pneg %p59
        %p157 = pneg %p56
        %p158 = pneg %p80
        %p159 = pneg %p77
        %p160 = pneg %p106
        %p161 = pneg %p103
        %s162 = sand.u32 %s93, 1
        %s163 = scalar_lea.sflag [#allocation4], %s162
        %s164 = sand.u32 %s93, 1
        %s165 = smul.addr %s164, 32
        %s166 = scalar_lea.vmem [#allocation3], %s165
        %s167 = smul.u32 8, %s17
        %p168 = scmp.lt.s32.totalorder %s167, 15
        %s169 = scalar_select %p168, %s167, 15
        %s170 = smul.addr %s169, 2
        %s171 = smul.addr %s170, 8
        %s172 = scalar_lea.vmem %s0, %s171
        %s173 = smul.u32 8, %s17
        %s174 = smul.u32 2, %s17
        %v175 = vld [vmem:[%s172] sm:$0xff]
        %v176 = vld [vmem:[%s172 + $0x8] sm:$0xff]
        %v177 = vld [vmem:[%s172 + $0x10] sm:$0xff]
        %v178 = vld [vmem:[%s172 + $0x18] sm:$0xff]
        %v179 = vld [vmem:[%s172 + $0x20] sm:$0xff]
        %v180 = vld [vmem:[%s172 + $0x28] sm:$0xff]
        %v181 = vld [vmem:[%s172 + $0x30] sm:$0xff]
        %v182 = vld [vmem:[%s172 + $0x38] sm:$0xff]
        %v183 = vld [vmem:[%s172 + $0x40] sm:$0xff]
        %v184 = vld [vmem:[%s172 + $0x48] sm:$0xff]
        %v185 = vld [vmem:[%s172 + $0x50] sm:$0xff]
        %v186 = vld [vmem:[%s172 + $0x58] sm:$0xff]
        %v187 = vld [vmem:[%s172 + $0x60] sm:$0xff]
        %v188 = vld [vmem:[%s172 + $0x68] sm:$0xff]
        %v189 = vld [vmem:[%s172 + $0x70] sm:$0xff]
        %v190 = vld [vmem:[%s172 + $0x78] sm:$0xff]
        %v191 = vld [vmem:[%s2] sm:$0xf]
        %vm192 = vcmask 31744
        %v194 = vsel %vm192, %v175, 0
        %v197 = vsel %vm192, %v176, 0
        %v200 = vsel %vm192, %v177, 0
        %v203 = vsel %vm192, %v178, 0
        %v206 = vsel %vm192, %v179, 0
        %v209 = vsel %vm192, %v180, 0
        %v212 = vsel %vm192, %v181, 0
        %v215 = vsel %vm192, %v182, 0
        %v218 = vsel %vm192, %v183, 0
        %v221 = vsel %vm192, %v184, 0
        %v224 = vsel %vm192, %v185, 0
        %v227 = vsel %vm192, %v186, 0
        %v230 = vsel %vm192, %v187, 0
        %v233 = vsel %vm192, %v188, 0
        %v236 = vsel %vm192, %v189, 0
        %v239 = vsel %vm192, %v190, 0
        %vm241 = vcmask 1043456
        %v243 = vsel %vm241, %v191, 0
        %245 = vmatprep.subr.mxu0 0.0
        %246 = vmatpush1.msra.mxu0 %v243
        %247 = vmatprep.subr.mxu0 0.0
        %248 = vmatpush1.msra.mxu0 0.0
        %249 = vmatprep.subr.mxu0 0.0
        %250 = vmatpush1.msra.mxu0 0.0
        %251 = vmatprep.subr.mxu0 0.0
        %252 = vmatpush1.msra.mxu0 0.0
        %253 = vmatprep.subr.mxu0 0.0
        %254 = vmatpush1.msra.mxu0 0.0
        %255 = vmatprep.subr.mxu0 0.0
        %256 = vmatpush1.msra.mxu0 0.0
        %257 = vmatprep.subr.mxu0 0.0
        %258 = vmatpush1.msra.mxu0 0.0
        %259 = vmatprep.subr.mxu0 0.0
        %260 = vmatpush1.msra.mxu0 0.0
        %261 = vmatprep.subr.mxu0 0.0
        %262 = vmatpush1.msra.mxu0 0.0
        %263 = vmatprep.subr.mxu0 0.0
        %264 = vmatpush1.msra.mxu0 0.0
        %265 = vmatprep.subr.mxu0 0.0
        %266 = vmatpush1.msra.mxu0 0.0
        %267 = vmatprep.subr.mxu0 0.0
        %268 = vmatpush1.msra.mxu0 0.0
        %269 = vmatprep.subr.mxu0 0.0
        %270 = vmatpush1.msra.mxu0 0.0
        %271 = vmatprep.subr.mxu0 0.0
        %272 = vmatpush1.msra.mxu0 0.0
        %273 = vmatprep.subr.mxu0 0.0
        %274 = vmatpush1.msra.mxu0 0.0
        %275 = vmatprep.subr.mxu0 0.0
        %276 = vmatpush1.msra.mxu0 0.0
        %277 = vmatprep.subr.mxu0 0.0
        %278 = vmatpush1.msra.mxu0 0.0
        %279 = vmatprep.subr.mxu0 0.0
        %280 = vmatpush1.msra.mxu0 0.0
        %281 = vmatprep.subr.mxu0 0.0
        %282 = vmatpush1.msra.mxu0 0.0
        %283 = vmatprep.subr.mxu0 0.0
        %284 = vmatpush1.msra.mxu0 0.0
        %285 = vmatprep.subr.mxu0 0.0
        %286 = vmatpush1.msra.mxu0 0.0
        %287 = vmatprep.subr.mxu0 0.0
        %288 = vmatpush1.msra.mxu0 0.0
        %289 = vmatprep.subr.mxu0 0.0
        %290 = vmatpush1.msra.mxu0 0.0
        %291 = vmatprep.subr.mxu0 0.0
        %292 = vmatpush1.msra.mxu0 0.0
        %293 = vmatprep.subr.mxu0 0.0
        %294 = vmatpush1.msra.mxu0 0.0
        %295 = vmatprep.subr.mxu0 0.0
        %296 = vmatpush1.msra.mxu0 0.0
        %297 = vmatprep.subr.mxu0 0.0
        %298 = vmatpush1.msra.mxu0 0.0
        %299 = vmatprep.subr.mxu0 0.0
        %300 = vmatpush1.msra.mxu0 0.0
        %301 = vmatprep.subr.mxu0 0.0
        %302 = vmatpush1.msra.mxu0 0.0
        %303 = vmatprep.subr.mxu0 0.0
        %304 = vmatpush1.msra.mxu0 0.0
        %305 = vmatprep.subr.mxu0 0.0
        %306 = vmatpush1.msra.mxu0 0.0
        %307 = vmatprep.subr.mxu0 0.0
        %308 = vmatpush1.msra.mxu0 0.0
        %309 = vmatprep.mubr.f32.mxu0 0.0
        %310 = vmatmul.mubr.f32.gmra.mrb[0].mxu0 %v194
        %v311 = vpop.f32.mrb[0].mxu0
        %v312 = vadd.f32 0.0, %v311
        %v313 = vpop.f32.mrb[0].mxu0
        %314 = vmatprep.mubr.f32.mxu0 0.0
        %315 = vmatmul.mubr.f32.gmra.mrb[0].mxu0 %v197
        %v316 = vpop.f32.mrb[0].mxu0
        %v317 = vadd.f32 0.0, %v316
        %v318 = vpop.f32.mrb[0].mxu0
        %319 = vmatprep.mubr.f32.mxu0 0.0
        %320 = vmatmul.mubr.f32.gmra.mrb[0].mxu0 %v200
        %v321 = vpop.f32.mrb[0].mxu0
        %v322 = vadd.f32 0.0, %v321
        %v323 = vpop.f32.mrb[0].mxu0
        %324 = vmatprep.mubr.f32.mxu0 0.0
        %325 = vmatmul.mubr.f32.gmra.mrb[0].mxu0 %v203
        %v326 = vpop.f32.mrb[0].mxu0
        %v327 = vadd.f32 0.0, %v326
        %v328 = vpop.f32.mrb[0].mxu0
        %329 = vmatprep.mubr.f32.mxu0 0.0
        %330 = vmatmul.mubr.f32.gmra.mrb[0].mxu0 %v206
        %v331 = vpop.f32.mrb[0].mxu0
        %v332 = vadd.f32 0.0, %v331
        %v333 = vpop.f32.mrb[0].mxu0
        %334 = vmatprep.mubr.f32.mxu0 0.0
        %335 = vmatmul.mubr.f32.gmra.mrb[0].mxu0 %v209
        %v336 = vpop.f32.mrb[0].mxu0
        %v337 = vadd.f32 0.0, %v336
        %v338 = vpop.f32.mrb[0].mxu0
        %339 = vmatprep.mubr.f32.mxu0 0.0
        %340 = vmatmul.mubr.f32.gmra.mrb[0].mxu0 %v212
        %v341 = vpop.f32.mrb[0].mxu0
        %v342 = vadd.f32 0.0, %v341
        %v343 = vpop.f32.mrb[0].mxu0
        %344 = vmatprep.mubr.f32.mxu0 0.0
        %345 = vmatmul.mubr.f32.gmra.mrb[0].mxu0 %v215
        %v346 = vpop.f32.mrb[0].mxu0
        %v347 = vadd.f32 0.0, %v346
        %v348 = vpop.f32.mrb[0].mxu0
        %349 = vmatprep.mubr.f32.mxu0 0.0
        %350 = vmatmul.mubr.f32.gmra.mrb[0].mxu0 %v218
        %v351 = vpop.f32.mrb[0].mxu0
        %v352 = vadd.f32 0.0, %v351
        %v353 = vpop.f32.mrb[0].mxu0
        %354 = vmatprep.mubr.f32.mxu0 0.0
        %355 = vmatmul.mubr.f32.gmra.mrb[0].mxu0 %v221
        %v356 = vpop.f32.mrb[0].mxu0
        %v357 = vadd.f32 0.0, %v356
        %v358 = vpop.f32.mrb[0].mxu0
        %359 = vmatprep.mubr.f32.mxu0 0.0
        %360 = vmatmul.mubr.f32.gmra.mrb[0].mxu0 %v224
        %v361 = vpop.f32.mrb[0].mxu0
        %v362 = vadd.f32 0.0, %v361
        %v363 = vpop.f32.mrb[0].mxu0
        %364 = vmatprep.mubr.f32.mxu0 0.0
        %365 = vmatmul.mubr.f32.gmra.mrb[0].mxu0 %v227
        %v366 = vpop.f32.mrb[0].mxu0
        %v367 = vadd.f32 0.0, %v366
        %v368 = vpop.f32.mrb[0].mxu0
        %369 = vmatprep.mubr.f32.mxu0 0.0
        %370 = vmatmul.mubr.f32.gmra.mrb[0].mxu0 %v230
        %v371 = vpop.f32.mrb[0].mxu0
        %v372 = vadd.f32 0.0, %v371
        %v373 = vpop.f32.mrb[0].mxu0
        %374 = vmatprep.mubr.f32.mxu0 0.0
        %375 = vmatmul.mubr.f32.gmra.mrb[0].mxu0 %v233
        %v376 = vpop.f32.mrb[0].mxu0
        %v377 = vadd.f32 0.0, %v376
        %v378 = vpop.f32.mrb[0].mxu0
        %379 = vmatprep.mubr.f32.mxu0 0.0
        %380 = vmatmul.mubr.f32.gmra.mrb[0].mxu0 %v236
        %v381 = vpop.f32.mrb[0].mxu0
        %v382 = vadd.f32 0.0, %v381
        %v383 = vpop.f32.mrb[0].mxu0
        %384 = vmatprep.mubr.f32.mxu0 0.0
        %385 = vmatmul.mubr.f32.gmra.mrb[0].mxu0 %v239
        %v386 = vpop.f32.mrb[0].mxu0
        %v387 = vadd.f32 0.0, %v386
        %v388 = vpop.f32.mrb[0].mxu0
        %389 = vdwg.mxu0
        %vm390 = vcmask 261120
        %391 = vst.msk [vmem:[#allocation2] sm:$0xff] %vm390, %v312
        %392 = vst.msk [vmem:[#allocation2 + $0x10] sm:$0xff] %vm390, %v317
        %395 = vrot.lane.b32.xlu0 %v322, 32
        %v396 = vpop.permute.xlu0 %395
        %397 = vrot.lane.b32.xlu0 %v327, 32
        %v398 = vpop.permute.xlu0 %397
        %vm401 = vcmask 523520
        %402 = vst.msk [vmem:[#allocation2] sm:$0xff] %vm401, %v396
        %403 = vst.msk [vmem:[#allocation2 + $0x10] sm:$0xff] %vm401, %v398
        %406 = vrot.lane.b32.xlu0 %v332, 64
        %v407 = vpop.permute.xlu0 %406
        %408 = vrot.lane.b32.xlu0 %v337, 64
        %v409 = vpop.permute.xlu0 %408
        %vm412 = vcmask 785920
        %413 = vst.msk [vmem:[#allocation2] sm:$0xff] %vm412, %v407
        %414 = vst.msk [vmem:[#allocation2 + $0x10] sm:$0xff] %vm412, %v409
        %417 = vrot.lane.b32.xlu0 %v342, 96
        %v418 = vpop.permute.xlu0 %417
        %419 = vrot.lane.b32.xlu0 %v347, 96
        %v420 = vpop.permute.xlu0 %419
        %vm423 = vcmask 1048320
        %424 = vst.msk [vmem:[#allocation2] sm:$0xff] %vm423, %v418
        %425 = vst.msk [vmem:[#allocation2 + $0x10] sm:$0xff] %vm423, %v420
        %426 = vst.msk [vmem:[#allocation2 + $0x8] sm:$0xff] %vm390, %v352
        %427 = vst.msk [vmem:[#allocation2 + $0x18] sm:$0xff] %vm390, %v357
        %430 = vrot.lane.b32.xlu0 %v362, 32
        %v431 = vpop.permute.xlu0 %430
        %432 = vrot.lane.b32.xlu0 %v367, 32
        %v433 = vpop.permute.xlu0 %432
        %436 = vst.msk [vmem:[#allocation2 + $0x8] sm:$0xff] %vm401, %v431
        %437 = vst.msk [vmem:[#allocation2 + $0x18] sm:$0xff] %vm401, %v433
        %440 = vrot.lane.b32.xlu0 %v372, 64
        %v441 = vpop.permute.xlu0 %440
        %442 = vrot.lane.b32.xlu0 %v377, 64
        %v443 = vpop.permute.xlu0 %442
        %446 = vst.msk [vmem:[#allocation2 + $0x8] sm:$0xff] %vm412, %v441
        %447 = vst.msk [vmem:[#allocation2 + $0x18] sm:$0xff] %vm412, %v443
        %450 = vrot.lane.b32.xlu0 %v382, 96
        %v451 = vpop.permute.xlu0 %450
        %452 = vrot.lane.b32.xlu0 %v387, 96
        %v453 = vpop.permute.xlu0 %452
        %456 = vst.msk [vmem:[#allocation2 + $0x8] sm:$0xff] %vm423, %v451
        %457 = vst.msk [vmem:[#allocation2 + $0x18] sm:$0xff] %vm423, %v453
        %460 = vrot.lane.b32.xlu0 %v312, 96
        %v461 = vpop.permute.xlu0 %460
        %462 = vrot.lane.b32.xlu0 %v317, 96
        %v463 = vpop.permute.xlu0 %462
        %466 = vst.msk [vmem:[#allocation2 + $0x20] sm:$0xff] %vm390, %v461
        %467 = vst.msk [vmem:[#allocation2 + $0x30] sm:$0xff] %vm390, %v463
        %468 = vst.msk [vmem:[#allocation2 + $0x20] sm:$0xff] %vm401, %v322
        %469 = vst.msk [vmem:[#allocation2 + $0x30] sm:$0xff] %vm401, %v327
        %470 = vrot.lane.b32.xlu0 %v332, 32
        %v471 = vpop.permute.xlu0 %470
        %472 = vrot.lane.b32.xlu0 %v337, 32
        %v473 = vpop.permute.xlu0 %472
        %476 = vst.msk [vmem:[#allocation2 + $0x20] sm:$0xff] %vm412, %v471
        %477 = vst.msk [vmem:[#allocation2 + $0x30] sm:$0xff] %vm412, %v473
        %478 = vrot.lane.b32.xlu0 %v342, 64
        %v479 = vpop.permute.xlu0 %478
        %480 = vrot.lane.b32.xlu0 %v347, 64
        %v481 = vpop.permute.xlu0 %480
        %484 = vst.msk [vmem:[#allocation2 + $0x20] sm:$0xff] %vm423, %v479
        %485 = vst.msk [vmem:[#allocation2 + $0x30] sm:$0xff] %vm423, %v481
        %488 = vrot.lane.b32.xlu0 %v352, 96
        %v489 = vpop.permute.xlu0 %488
        %490 = vrot.lane.b32.xlu0 %v357, 96
        %v491 = vpop.permute.xlu0 %490
        %494 = vst.msk [vmem:[#allocation2 + $0x28] sm:$0xff] %vm390, %v489
        %495 = vst.msk [vmem:[#allocation2 + $0x38] sm:$0xff] %vm390, %v491
        %496 = vst.msk [vmem:[#allocation2 + $0x28] sm:$0xff] %vm401, %v362
        %497 = vst.msk [vmem:[#allocation2 + $0x38] sm:$0xff] %vm401, %v367
        %498 = vrot.lane.b32.xlu0 %v372, 32
        %v499 = vpop.permute.xlu0 %498
        %500 = vrot.lane.b32.xlu0 %v377, 32
        %v501 = vpop.permute.xlu0 %500
        %504 = vst.msk [vmem:[#allocation2 + $0x28] sm:$0xff] %vm412, %v499
        %505 = vst.msk [vmem:[#allocation2 + $0x38] sm:$0xff] %vm412, %v501
        %506 = vrot.lane.b32.xlu0 %v382, 64
        %v507 = vpop.permute.xlu0 %506
        %508 = vrot.lane.b32.xlu0 %v387, 64
        %v509 = vpop.permute.xlu0 %508
        %512 = vst.msk [vmem:[#allocation2 + $0x28] sm:$0xff] %vm423, %v507
        %513 = vst.msk [vmem:[#allocation2 + $0x38] sm:$0xff] %vm423, %v509
        %514 = vrot.lane.b32.xlu0 %v312, 64
        %v515 = vpop.permute.xlu0 %514
        %516 = vrot.lane.b32.xlu0 %v317, 64
        %v517 = vpop.permute.xlu0 %516
        %520 = vst.msk [vmem:[#allocation2 + $0x40] sm:$0xff] %vm390, %v515
        %521 = vst.msk [vmem:[#allocation2 + $0x50] sm:$0xff] %vm390, %v517
        %522 = vrot.lane.b32.xlu0 %v322, 96
        %v523 = vpop.permute.xlu0 %522
        %524 = vrot.lane.b32.xlu0 %v327, 96
        %v525 = vpop.permute.xlu0 %524
        %528 = vst.msk [vmem:[#allocation2 + $0x40] sm:$0xff] %vm401, %v523
        %529 = vst.msk [vmem:[#allocation2 + $0x50] sm:$0xff] %vm401, %v525
        %530 = vst.msk [vmem:[#allocation2 + $0x40] sm:$0xff] %vm412, %v332
        %531 = vst.msk [vmem:[#allocation2 + $0x50] sm:$0xff] %vm412, %v337
        %532 = vrot.lane.b32.xlu0 %v342, 32
        %v533 = vpop.permute.xlu0 %532
        %534 = vrot.lane.b32.xlu0 %v347, 32
        %v535 = vpop.permute.xlu0 %534
        %538 = vst.msk [vmem:[#allocation2 + $0x40] sm:$0xff] %vm423, %v533
        %539 = vst.msk [vmem:[#allocation2 + $0x50] sm:$0xff] %vm423, %v535
        %540 = vrot.lane.b32.xlu0 %v352, 64
        %v541 = vpop.permute.xlu0 %540
        %542 = vrot.lane.b32.xlu0 %v357, 64
        %v543 = vpop.permute.xlu0 %542
        %546 = vst.msk [vmem:[#allocation2 + $0x48] sm:$0xff] %vm390, %v541
        %547 = vst.msk [vmem:[#allocation2 + $0x58] sm:$0xff] %vm390, %v543
        %548 = vrot.lane.b32.xlu0 %v362, 96
        %v549 = vpop.permute.xlu0 %548
        %550 = vrot.lane.b32.xlu0 %v367, 96
        %v551 = vpop.permute.xlu0 %550
        %554 = vst.msk [vmem:[#allocation2 + $0x48] sm:$0xff] %vm401, %v549
        %555 = vst.msk [vmem:[#allocation2 + $0x58] sm:$0xff] %vm401, %v551
        %556 = vst.msk [vmem:[#allocation2 + $0x48] sm:$0xff] %vm412, %v372
        %557 = vst.msk [vmem:[#allocation2 + $0x58] sm:$0xff] %vm412, %v377
        %558 = vrot.lane.b32.xlu0 %v382, 32
        %v559 = vpop.permute.xlu0 %558
        %560 = vrot.lane.b32.xlu0 %v387, 32
        %v561 = vpop.permute.xlu0 %560
        %564 = vst.msk [vmem:[#allocation2 + $0x48] sm:$0xff] %vm423, %v559
        %565 = vst.msk [vmem:[#allocation2 + $0x58] sm:$0xff] %vm423, %v561
        %v566 = vld [vmem:[%s1] sm:$0xff]
        %v567 = vld [vmem:[%s1 + $0x8] sm:$0xff]
        %v568 = vld [vmem:[#allocation2] sm:$0xff]
        %v569 = vld [vmem:[#allocation2 + $0x8] sm:$0xff]
        %v570 = vld [vmem:[#allocation2 + $0x10] sm:$0xff]
        %v571 = vld [vmem:[#allocation2 + $0x18] sm:$0xff]
        %v572 = vld [vmem:[#allocation2 + $0x20] sm:$0xff]
        %v573 = vld [vmem:[#allocation2 + $0x28] sm:$0xff]
        %v574 = vld [vmem:[#allocation2 + $0x30] sm:$0xff]
        %v575 = vld [vmem:[#allocation2 + $0x38] sm:$0xff]
        %v576 = vld [vmem:[#allocation2 + $0x40] sm:$0xff]
        %v577 = vld [vmem:[#allocation2 + $0x48] sm:$0xff]
        %v578 = vld [vmem:[#allocation2 + $0x50] sm:$0xff]
        %v579 = vld [vmem:[#allocation2 + $0x58] sm:$0xff]
        %vm580 = vcmask 392192
        %v582 = vsel %vm580, %v566, 0
        %v585 = vsel %vm580, %v567, 0
        %587 = vmatprep.subr.mxu0 %v569
        %588 = vmatpush1.msra.mxu0 %v568
        %589 = vmatprep.subr.mxu0 %v571
        %590 = vmatpush1.msra.mxu0 %v570
        %591 = vmatprep.subr.mxu0 %v573
        %592 = vmatpush1.msra.mxu0 %v572
        %593 = vmatprep.subr.mxu0 %v575
        %594 = vmatpush1.msra.mxu0 %v574
        %595 = vmatprep.subr.mxu0 %v577
        %596 = vmatpush1.msra.mxu0 %v576
        %597 = vmatprep.subr.mxu0 %v579
        %598 = vmatpush1.msra.mxu0 %v578
        %599 = vmatprep.subr.mxu0 0.0
        %600 = vmatpush1.msra.mxu0 0.0
        %601 = vmatprep.subr.mxu0 0.0
        %602 = vmatpush1.msra.mxu0 0.0
        %603 = vmatprep.subr.mxu0 0.0
        %604 = vmatpush1.msra.mxu0 0.0
        %605 = vmatprep.subr.mxu0 0.0
        %606 = vmatpush1.msra.mxu0 0.0
        %607 = vmatprep.subr.mxu0 0.0
        %608 = vmatpush1.msra.mxu0 0.0
        %609 = vmatprep.subr.mxu0 0.0
        %610 = vmatpush1.msra.mxu0 0.0
        %611 = vmatprep.subr.mxu0 0.0
        %612 = vmatpush1.msra.mxu0 0.0
        %613 = vmatprep.subr.mxu0 0.0
        %614 = vmatpush1.msra.mxu0 0.0
        %615 = vmatprep.subr.mxu0 0.0
        %616 = vmatpush1.msra.mxu0 0.0
        %617 = vmatprep.subr.mxu0 0.0
        %618 = vmatpush1.msra.mxu0 0.0
        %619 = vmatprep.subr.mxu0 0.0
        %620 = vmatpush1.msra.mxu0 0.0
        %621 = vmatprep.subr.mxu0 0.0
        %622 = vmatpush1.msra.mxu0 0.0
        %623 = vmatprep.subr.mxu0 0.0
        %624 = vmatpush1.msra.mxu0 0.0
        %625 = vmatprep.subr.mxu0 0.0
        %626 = vmatpush1.msra.mxu0 0.0
        %627 = vmatprep.subr.mxu0 0.0
        %628 = vmatpush1.msra.mxu0 0.0
        %629 = vmatprep.subr.mxu0 0.0
        %630 = vmatpush1.msra.mxu0 0.0
        %631 = vmatprep.subr.mxu0 0.0
        %632 = vmatpush1.msra.mxu0 0.0
        %633 = vmatprep.subr.mxu0 0.0
        %634 = vmatpush1.msra.mxu0 0.0
        %635 = vmatprep.subr.mxu0 0.0
        %636 = vmatpush1.msra.mxu0 0.0
        %637 = vmatprep.subr.mxu0 0.0
        %638 = vmatpush1.msra.mxu0 0.0
        %639 = vmatprep.subr.mxu0 0.0
        %640 = vmatpush1.msra.mxu0 0.0
        %641 = vmatprep.subr.mxu0 0.0
        %642 = vmatpush1.msra.mxu0 0.0
        %643 = vmatprep.subr.mxu0 0.0
        %644 = vmatpush1.msra.mxu0 0.0
        %645 = vmatprep.subr.mxu0 0.0
        %646 = vmatpush1.msra.mxu0 0.0
        %647 = vmatprep.subr.mxu0 0.0
        %648 = vmatpush1.msra.mxu0 0.0
        %649 = vmatprep.subr.mxu0 0.0
        %650 = vmatpush1.msra.mxu0 0.0
        %651 = vmatprep.mubr.f32.mxu0 0.0
        %652 = vmatmul.mubr.f32.gmra.mrb[0].mxu0 %v582
        %v653 = vpop.f32.mrb[0].mxu0
        %v654 = vadd.f32 0.0, %v653
        %v655 = vpop.f32.mrb[0].mxu0
        %v656 = vadd.f32 0.0, %v655
        %657 = vmatprep.mubr.f32.mxu0 0.0
        %658 = vmatmul.mubr.f32.gmra.mrb[0].mxu0 %v585
        %v659 = vpop.f32.mrb[0].mxu0
        %v660 = vadd.f32 0.0, %v659
        %v661 = vpop.f32.mrb[0].mxu0
        %v662 = vadd.f32 0.0, %v661
        %663 = vdwg.mxu0
        %v664 = vmax.f32 %v654, 0.0
        %v665 = vmax.f32 %v656, 0.0
        %v666 = vmax.f32 %v660, 0.0
        %v667 = vmax.f32 %v662, 0.0
        %668 = vst [vmem:[%s166] sm:$0xff] %v664
        %669 = vst [vmem:[%s166 + $0x8] sm:$0xff] %v665
        %670 = vst [vmem:[%s166 + $0x10] sm:$0xff] %v666
        %671 = vst [vmem:[%s166 + $0x18] sm:$0xff] %v667
        %s672 = sand.u32 %s93, 1
        %s673 = scalar_lea.sflag [#allocation4], %s672
        %s674 = sand.u32 %s93, 1
        %s675 = smul.addr %s674, 32
        %s676 = scalar_lea.vmem [#allocation3], %s675
        // Predicated region
        $region33: #{tpu_custom_call.1} parent=31 // pred_check
          %p677 = pneg %p103
        $region34: #{tpu_custom_call.1} parent=31 // pred_check_branch
          %679 = sbr.rel (%p677) target = $region36
        $region35: #{tpu_custom_call.1} parent=31 // pred_region
          %s680 = smul.u32 2, %s17
          %s682 = ssub.s32 512, 512
          %683 = vsyncadd %s673, %s682
          %s684 = smul.addr %s680, 128
          %s685 = scalar_lea.hbm %s3, %s684
          %s686 = sshll.u32 %s676, 4
          %s687 = int_to_ptr.vmem [resolvable:$true] %s686
          %692 = dma.vmem_to_hbm [thread:$0]  %s687, 512, %s685, %s673, 256, 512, 16
        $region36: #{tpu_custom_call.1} parent=31 // pred_fallthru
          _
      $region32: #{tpu_custom_call.1} parent=5 // pred_fallthru
        _
      %p693 = scmp.le.s32.totalorder 2, %s12
      // Predicated region
      $region37: #{tpu_custom_call.1} parent=5 // pred_check
        %p694 = pneg %p693
      $region38: #{tpu_custom_call.1} parent=5 // pred_check_branch
        %696 = sbr.rel (%p694) target = $region40
      $region39: #{tpu_custom_call.1} parent=5 // pred_region
        %s697 = ssub.s32 %s12, 2
        // Predicated region
        $region41: #{tpu_custom_call.1} parent=39 // pred_check
          %p698 = pneg %p109
        $region42: #{tpu_custom_call.1} parent=39 // pred_check_branch
          %700 = sbr.rel (%p698) target = $region44
        $region43: #{tpu_custom_call.1} parent=39 // pred_region
          %s701 = sand.u32 %s94, 1
          %s702 = scalar_lea.sflag [#allocation4], %s701
          %s703 = sand.u32 %s94, 1
          %s704 = smul.addr %s703, 32
          %s705 = scalar_lea.vmem [#allocation3], %s704
          %706 = dma.done %s702, 512
        $region44: #{tpu_custom_call.1} parent=39 // pred_fallthru
          _
      $region40: #{tpu_custom_call.1} parent=5 // pred_fallthru
        _
    $region6: #{tpu_custom_call.1} parent=1 // loop_footer
      %s16 = sadd.s32 1, %s12
    $region7: #{tpu_custom_call.1} parent=1 // loop_footer_branch
      %11 = sbr.rel target = $region3
    $region8: #{tpu_custom_call.1} parent=1 // loop_exit
      _
    %707 = vsyncpa [#allocation4], 1
    %s708 = scalar_lea.sflag [#allocation4], 1
    %709 = vsyncpa %s708, 1

</llo_original>
